<compile_context>
chip_gen: v5e
topology: v5e:2x2
jax: 0.10.0
libtpu: 0.0.40
codegen_flags: <defaults>
</compile_context>

<pallas_src>
import math

import jax
import jax.numpy as jnp
from jax.experimental import pallas as pl
from jax.experimental.pallas import tpu as pltpu


def _round_up(x, m):
    return (x + m - 1) // m * m


def _pad2d(x, rows, cols):
    r, c = x.shape
    if r == rows and c == cols:
        return x
    return jnp.pad(x, ((0, rows - r), (0, cols - c)))


# --------------------------------------------------------------------------- #
# Kernel body
# --------------------------------------------------------------------------- #
def _fusion_kernel(v_ref, q_ref, wv_ref, bv_ref, wq_ref, bq_ref, out_ref):
    # Linear_v + ReLU.  Activations cast to bf16 on the VPU right before the
    # MXU push (weights are already bf16); accumulate in f32.
    x_v = jnp.dot(v_ref[...].astype(jnp.bfloat16), wv_ref[...],
                  preferred_element_type=jnp.float32)
    x_v = jnp.maximum(x_v + bv_ref[...], 0.0)

    # Linear_q + ReLU.
    x_q = jnp.dot(q_ref[...].astype(jnp.bfloat16), wq_ref[...],
                  preferred_element_type=jnp.float32)
    x_q = jnp.maximum(x_q + bq_ref[...], 0.0)

    # torch.pow(x_q, 2) * torch.pow(x_v, 1); single cast at the store.
    out_ref[...] = (x_q * x_q * x_v).astype(out_ref.dtype)


# --------------------------------------------------------------------------- #
# Tiling / VMEM planning
# --------------------------------------------------------------------------- #
def _vmem_capacity_bytes():
    """Physical VMEM of the running chip; conservative 64 MiB fallback."""
    try:
        info = pltpu.get_tpu_info()
        cap = getattr(info, "vmem_capacity_bytes", None)
        if cap:
            return int(cap)
    except Exception:
        pass
    return 64 << 20  # v7x per-TensorCore VMEM; safe lower bound for all gens


def _estimate_vmem(tile_b, tile_n, dim_v, dim_q, in_sz, out_sz):
    """Conservative VMEM footprint of one pipelined grid step (bytes)."""
    k = dim_v + dim_q
    need = 2 * tile_b * k * in_sz          # activation tiles, double-buffered
    need += 2 * k * tile_n * 2             # bf16 weight slabs, 2 buffers
    need += 2 * 2 * tile_n * 4             # f32 bias slabs, 2 buffers
    need += 2 * tile_b * tile_n * out_sz   # output tiles, double-buffered
    need += 2 * tile_b * tile_n * 4        # x_v / x_q f32 MXU intermediates
    need += tile_b * k * 2                 # in-kernel bf16 casts of activations
    return int(need * 1.15) + (2 << 20)    # layout slack + internal scratch


def _choose_tiles(B, dim_v, dim_q, dim_h, in_sz, out_sz, budget,
                  tile_b_req, tile_n_req):
    """Pick (tile_b, tile_n, Hp): prefer full-Hp resident weights, then the
    largest batch tile that fits the per-generation VMEM budget."""
    if tile_n_req is not None:
        tn = _round_up(int(tile_n_req), 128)
        Hp = _round_up(dim_h, tn)
        n_cands = [tn]
    else:
        Hp = _round_up(dim_h, 128)
        n_cands = [n for n in range(Hp, 127, -128) if Hp % n == 0]  # Hp first

    b_align = 128 if B >= 128 else 8       # feed the MXU full rows when we can
    b_base = _round_up(B, b_align)
    if tile_b_req is not None:
        b_cands = [_round_up(int(tile_b_req), b_align)]
    else:
        hi = min(1024, max(b_base, b_align))
        cand = {1024, 512, 256, 128, 64, 32, 16, 8, b_base}
        b_cands = sorted([b for b in cand
                          if b % b_align == 0 and b_align <= b <= hi],
                         reverse=True)
        if not b_cands:
            b_cands = [b_align]

    for tn in n_cands:                      # bigger tile_n = fewer activation passes
        for tb in b_cands:                  # bigger tile_b = fewer grid steps
            if _estimate_vmem(tb, tn, dim_v, dim_q, in_sz, out_sz) <= budget:
                return tb, tn, Hp
    # Nothing fits the estimate: take the smallest candidates; vmem_limit is
    # clamped to the physical budget below.
    return b_cands[-1], n_cands[-1], Hp


# --------------------------------------------------------------------------- #
# Public wrapper
# --------------------------------------------------------------------------- #
def minhmul_fusion(input_v, input_q, w_v, b_v, w_q, b_q, *,
                   tile_b=None, tile_n=None, out_dtype=None):
    """Fused forward pass of MinhmulFusion.

    input_v: [B, dim_v], input_q: [B, dim_q]
    w_v: [dim_v, dim_h] (pre-transposed), b_v: [1, dim_h] or [dim_h]
    w_q: [dim_q, dim_h],                  b_q: [1, dim_h] or [dim_h]
    out_dtype: defaults to input_v.dtype; pass jnp.bfloat16 to halve the
               output HBM writeback on mem-bound v5e/v6e.
    returns: [B, dim_h]

    Note: matmul operands are computed in bf16 (f32 accumulation); callers
    needing strict f32 fidelity should not use this kernel.
    """
    B, dim_v = input_v.shape
    Bq, dim_q = input_q.shape
    assert B == Bq, "batch mismatch between input_v and input_q"
    assert w_v.shape[0] == dim_v and w_q.shape[0] == dim_q
    dim_h = w_v.shape[1]
    assert w_q.shape[1] == dim_h
    if out_dtype is None:
        out_dtype = input_v.dtype
    in_sz = jnp.dtype(input_v.dtype).itemsize
    out_sz = jnp.dtype(out_dtype).itemsize

    b_v = jnp.asarray(b_v, jnp.float32).reshape(1, -1)
    b_q = jnp.asarray(b_q, jnp.float32).reshape(1, -1)

    # ---- per-generation VMEM budget & tile selection ------------------------
    budget = int(0.8 * _vmem_capacity_bytes())   # ~102 MiB v5e/v6e, ~51 MiB v7x
    tile_b, tile_n, Hp = _choose_tiles(B, dim_v, dim_q, dim_h,
                                       in_sz, out_sz, budget, tile_b, tile_n)
    Bp = _round_up(B, tile_b)

    # ---- operand preparation -------------------------------------------------
    # Activations: passed through in their original dtype (no staging copy);
    # only pad rows if B is not a multiple of the batch tile.
    v_p = input_v if Bp == B else jnp.pad(input_v, ((0, Bp - B), (0, 0)))
    q_p = input_q if Bp == B else jnp.pad(input_q, ((0, Bp - B), (0, 0)))
    # Weights: one-time pad of the hidden dim to Hp + bf16 cast.  Contraction
    # dims stay un-padded (full-extent K blocks); the MXU pads internally.
    wv_p = _pad2d(w_v, dim_v, Hp).astype(jnp.bfloat16)
    wq_p = _pad2d(w_q, dim_q, Hp).astype(jnp.bfloat16)
    bv_p = _pad2d(b_v, 1, Hp)
    bq_p = _pad2d(b_q, 1, Hp)

    need = _estimate_vmem(tile_b, tile_n, dim_v, dim_q, in_sz, out_sz)
    vmem_limit = int(min(budget, max(need, 16 << 20)))

    # ---- advisory cost estimate for the XLA scheduler ------------------------
    passes = Hp // tile_n                   # activation re-read factor
    flops = 2 * Bp * Hp * (dim_v + dim_q) + 5 * Bp * Hp
    bytes_acc = (passes * Bp * (dim_v + dim_q) * in_sz     # activations
                 + (dim_v + dim_q) * Hp * 2 + 2 * Hp * 4   # weights + biases
                 + Bp * Hp * out_sz)                       # output
    cost = pl.CostEstimate(flops=int(flops), transcendentals=0,
                           bytes_accessed=int(bytes_acc))

    # ---- the pallas_call -----------------------------------------------------
    grid = (Hp // tile_n, Bp // tile_b)     # (h OUTER, batch INNER)
    call = pl.pallas_call(
        _fusion_kernel,
        out_shape=jax.ShapeDtypeStruct((Bp, Hp), out_dtype),
        grid_spec=pltpu.PrefetchScalarGridSpec(
            num_scalar_prefetch=0,
            grid=grid,
            in_specs=[
                pl.BlockSpec((tile_b, dim_v), lambda j, i: (i, 0)),  # input_v tile
                pl.BlockSpec((tile_b, dim_q), lambda j, i: (i, 0)),  # input_q tile
                pl.BlockSpec((dim_v, tile_n), lambda j, i: (0, j)),  # W_v slab
                pl.BlockSpec((1, tile_n), lambda j, i: (0, j)),      # b_v slab
                pl.BlockSpec((dim_q, tile_n), lambda j, i: (0, j)),  # W_q slab
                pl.BlockSpec((1, tile_n), lambda j, i: (0, j)),      # b_q slab
            ],
            out_specs=pl.BlockSpec((tile_b, tile_n), lambda j, i: (i, j)),
        ),
        compiler_params=pltpu.CompilerParams(
            dimension_semantics=("parallel", "parallel"),
            vmem_limit_bytes=vmem_limit,
        ),
        cost_estimate=cost,
    )
    out_p = call(v_p, q_p, wv_p, bv_p, wq_p, bq_p)
    return out_p[:B, :dim_h]


# --------------------------------------------------------------------------- #
# Reference & test
# --------------------------------------------------------------------------- #
def _init_linear(key, fan_in, fan_out, dtype=jnp.float32):
    """PyTorch-style Linear init: U(-1/sqrt(fan_in), +1/sqrt(fan_in)).
    Returns (weight_T [fan_in, fan_out], bias [1, fan_out])."""
    kw, kb = jax.random.split(key)
    bound = 1.0 / math.sqrt(fan_in)
    w = jax.random.uniform(kw, (fan_in, fan_out), dtype, -bound, bound)
    b = jax.random.uniform(kb, (1, fan_out), dtype, -bound, bound)
    return w, b


def _reference(input_v, input_q, w_v, b_v, w_q, b_q):
    x_v = jnp.maximum(input_v @ w_v + b_v, 0.0)
    x_q = jnp.maximum(input_q @ w_q + b_q, 0.0)
    return (x_q ** 2) * x_v


if __name__ == "__main__":
    # Small shapes consistent with the module's forward.  dim_h=320 and B=36
    # are deliberately NOT multiples of 128 so both padding paths and the
    # output slice are exercised.
    B, dim_v, dim_q, dim_h = 36, 48, 40, 320

    key = jax.random.PRNGKey(0)
    k_v, k_q, k_wv, k_wq = jax.random.split(key, 4)

    input_v = jax.random.normal(k_v, (B, dim_v), jnp.float32)
    input_q = jax.random.normal(k_q, (B, dim_q), jnp.float32)
    w_v, b_v = _init_linear(k_wv, dim_v, dim_h)
    w_q, b_q = _init_linear(k_wq, dim_q, dim_h)

    # References: (1) same bf16 operand quantization the kernel uses, (2) f32.
    ref_f32 = _reference(input_v, input_q, w_v, b_v, w_q, b_q)
    qz = lambda x: x.astype(jnp.bfloat16).astype(jnp.float32)
    ref_bf16 = _reference(qz(input_v), qz(input_q), qz(w_v), b_v, qz(w_q), b_q)

    # 1) Auto tiling: tile_n == Hp => weights fully VMEM-resident, activations
    #    streamed once, grid effectively 1-D over batch.
    out_auto = jax.block_until_ready(
        minhmul_fusion(input_v, input_q, w_v, b_v, w_q, b_q))
    assert out_auto.shape == (B, dim_h)
    assert jnp.allclose(out_auto, ref_bf16, atol=2e-3, rtol=2e-3), \
        "auto-tile mismatch vs bf16-quantized reference"
    assert jnp.allclose(out_auto, ref_f32, atol=5e-2, rtol=5e-2), \
        "auto-tile mismatch vs f32 reference"

    # 2) Explicit small tiles: exercises the 2-D (h outer, batch inner) grid,
    #    batch + hidden padding, and the activation re-stream fallback path.
    out_tiled = jax.block_until_ready(
        minhmul_fusion(input_v, input_q, w_v, b_v, w_q, b_q,
                       tile_b=16, tile_n=128))
    assert out_tiled.shape == (B, dim_h)
    assert jnp.allclose(out_tiled, ref_bf16, atol=2e-3, rtol=2e-3), \
        "explicit-tile mismatch vs bf16-quantized reference"
    assert jnp.allclose(out_tiled, ref_f32, atol=5e-2, rtol=5e-2), \
        "explicit-tile mismatch vs f32 reference"

    print("KERNEL_OK")
</pallas_src>

<mosaic_0001>
module attributes {stable_mosaic.version = 11 : i64} {
  func.func @_fusion_kernel(%arg0: i32, %arg1: i32, %arg2: memref<40x48xf32, #tpu.memory_space<vmem>>, %arg3: memref<40x40xf32, #tpu.memory_space<vmem>>, %arg4: memref<48x384xbf16, #tpu.memory_space<vmem>>, %arg5: memref<1x384xf32, #tpu.memory_space<vmem>>, %arg6: memref<40x384xbf16, #tpu.memory_space<vmem>>, %arg7: memref<1x384xf32, #tpu.memory_space<vmem>>, %arg8: memref<40x384xf32, #tpu.memory_space<vmem>>) attributes {dimension_semantics = [#tpu.dimension_semantics<parallel>, #tpu.dimension_semantics<parallel>], iteration_bounds = array<i64: 1, 1>, scalar_prefetch = 0 : i64, scratch_operands = 0 : i64, tpu.core_type = #tpu.core_type<tc>, window_params = [{transform_indices = @transform_0, window_bounds = array<i64: 40, 48>}, {transform_indices = @transform_1, window_bounds = array<i64: 40, 40>}, {transform_indices = @transform_2, window_bounds = array<i64: 48, 384>}, {transform_indices = @transform_3, window_bounds = array<i64: 1, 384>}, {transform_indices = @transform_4, window_bounds = array<i64: 40, 384>}, {transform_indices = @transform_5, window_bounds = array<i64: 1, 384>}, {transform_indices = @transform_6, window_bounds = array<i64: 40, 384>}]} {
    %c0 = arith.constant 0 : index
    %c0_0 = arith.constant 0 : index
    %0 = vector.load %arg2[%c0, %c0_0] : memref<40x48xf32, #tpu.memory_space<vmem>>, vector<40x48xf32>
    %1 = arith.truncf %0 : vector<40x48xf32> to vector<40x48xbf16>
    %c0_1 = arith.constant 0 : index
    %c0_2 = arith.constant 0 : index
    %2 = vector.load %arg4[%c0_1, %c0_2] : memref<48x384xbf16, #tpu.memory_space<vmem>>, vector<48x384xbf16>
    %cst = arith.constant dense<0.000000e+00> : vector<40x384xf32>
    %3 = tpu.matmul %1, %2, %cst {dimension_numbers = #tpu.dot_dimension_numbers<[1], [0], [0], [1], [0, 0, 1, 1], [], []>} : vector<40x48xbf16>, vector<48x384xbf16>, vector<40x384xf32> -> vector<40x384xf32>
    %c0_3 = arith.constant 0 : index
    %c0_4 = arith.constant 0 : index
    %4 = vector.load %arg5[%c0_3, %c0_4] : memref<1x384xf32, #tpu.memory_space<vmem>>, vector<1x384xf32>
    %5 = vector.broadcast %4 : vector<1x384xf32> to vector<40x384xf32>
    %6 = arith.addf %3, %5 : vector<40x384xf32>
    %cst_5 = arith.constant 0.000000e+00 : f32
    %7 = vector.broadcast %cst_5 : f32 to vector<40x384xf32>
    %8 = arith.maximumf %6, %7 : vector<40x384xf32>
    %c0_6 = arith.constant 0 : index
    %c0_7 = arith.constant 0 : index
    %9 = vector.load %arg3[%c0_6, %c0_7] : memref<40x40xf32, #tpu.memory_space<vmem>>, vector<40x40xf32>
    %10 = arith.truncf %9 : vector<40x40xf32> to vector<40x40xbf16>
    %c0_8 = arith.constant 0 : index
    %c0_9 = arith.constant 0 : index
    %11 = vector.load %arg6[%c0_8, %c0_9] : memref<40x384xbf16, #tpu.memory_space<vmem>>, vector<40x384xbf16>
    %cst_10 = arith.constant dense<0.000000e+00> : vector<40x384xf32>
    %12 = tpu.matmul %10, %11, %cst_10 {dimension_numbers = #tpu.dot_dimension_numbers<[1], [0], [0], [1], [0, 0, 1, 1], [], []>} : vector<40x40xbf16>, vector<40x384xbf16>, vector<40x384xf32> -> vector<40x384xf32>
    %c0_11 = arith.constant 0 : index
    %c0_12 = arith.constant 0 : index
    %13 = vector.load %arg7[%c0_11, %c0_12] : memref<1x384xf32, #tpu.memory_space<vmem>>, vector<1x384xf32>
    %14 = vector.broadcast %13 : vector<1x384xf32> to vector<40x384xf32>
    %15 = arith.addf %12, %14 : vector<40x384xf32>
    %cst_13 = arith.constant 0.000000e+00 : f32
    %16 = vector.broadcast %cst_13 : f32 to vector<40x384xf32>
    %17 = arith.maximumf %15, %16 : vector<40x384xf32>
    %18 = arith.mulf %17, %17 : vector<40x384xf32>
    %19 = arith.mulf %18, %8 : vector<40x384xf32>
    %c0_14 = arith.constant 0 : index
    %c0_15 = arith.constant 0 : index
    %20 = vector.load %arg8[%c0_14, %c0_15] : memref<40x384xf32, #tpu.memory_space<vmem>>, vector<40x384xf32>
    tpu.vector_store %arg8[%c0_14, %c0_15], %19 {strides = array<i32>} : memref<40x384xf32, #tpu.memory_space<vmem>>, vector<40x384xf32>,
    return
  }
  func.func @transform_0(%arg0: i32, %arg1: i32) -> (i32, i32) {
    %c0_i32 = arith.constant 0 : i32
    %c0_i32_0 = arith.constant 0 : i32
    return %arg1, %c0_i32 : i32, i32
  }
  func.func @transform_1(%arg0: i32, %arg1: i32) -> (i32, i32) {
    %c0_i32 = arith.constant 0 : i32
    %c0_i32_0 = arith.constant 0 : i32
    return %arg1, %c0_i32 : i32, i32
  }
  func.func @transform_2(%arg0: i32, %arg1: i32) -> (i32, i32) {
    %c0_i32 = arith.constant 0 : i32
    %c0_i32_0 = arith.constant 0 : i32
    return %c0_i32, %arg0 : i32, i32
  }
  func.func @transform_3(%arg0: i32, %arg1: i32) -> (i32, i32) {
    %c0_i32 = arith.constant 0 : i32
    %c0_i32_0 = arith.constant 0 : i32
    return %c0_i32, %arg0 : i32, i32
  }
  func.func @transform_4(%arg0: i32, %arg1: i32) -> (i32, i32) {
    %c0_i32 = arith.constant 0 : i32
    %c0_i32_0 = arith.constant 0 : i32
    return %c0_i32, %arg0 : i32, i32
  }
  func.func @transform_5(%arg0: i32, %arg1: i32) -> (i32, i32) {
    %c0_i32 = arith.constant 0 : i32
    %c0_i32_0 = arith.constant 0 : i32
    return %c0_i32, %arg0 : i32, i32
  }
  func.func @transform_6(%arg0: i32, %arg1: i32) -> (i32, i32) {
    %c0_i32 = arith.constant 0 : i32
    return %arg1, %arg0 : i32, i32
  }
}

</mosaic_0001>

<llo_original>
// kernel: tpu_custom_call.1
$region0: #{tpu_custom_call.1}
  #allocation0 [shape = 'u32[]', space=smem, size = 0x4, offset = 0x4, fixed_abs, tag = 'smem constant byte address 0x4 - core index']
  #allocation1 [shape = 'u32[72,128]{1,0:T(1,128)}', space=vmem, size = 0x9000, scoped, tag = 'internal scratch']
  %s0 = inlined_call_operand.hbm [shape: f32[40,48], index: 0, kind: input, shape index: {}]
  %s1 = inlined_call_operand.hbm [shape: f32[40,40], index: 1, kind: input, shape index: {}]
  %s2 = inlined_call_operand.hbm [shape: bf16[48,384], index: 2, kind: input, shape index: {}]
  %s3 = inlined_call_operand.hbm [shape: f32[1,384], index: 3, kind: input, shape index: {}]
  %s4 = inlined_call_operand.hbm [shape: bf16[40,384], index: 4, kind: input, shape index: {}]
  %s5 = inlined_call_operand.vmem [shape: f32[1,384], index: 5, kind: input, shape index: {}]
  %s6 = inlined_call_operand.hbm [shape: f32[40,384], index: 6, kind: output, shape index: {}]
  %s7 = sld [smem:[#allocation0]]
  $region54: #{tpu_custom_call.1} parent=0
    _
  %s9 = ssub.s32 1, %s7
  %s10 = scalar_select 0, %s9, %s7
  $region1: #{tpu_custom_call.1} parent=0
    #allocation2 [shape = 'u8[20480]{0}', space=vmem, size = 0x5000, scoped, tag = 'input window, operand 0, single buffered']
    #allocation3 [shape = 's32[1]{0}', space=sflag, size = 0x4, scoped, tag = 'scoped memory for tpu_custom_call.1']
    #allocation4 [shape = 's32[1]{0}', space=sflag, size = 0x4, scoped, tag = 'scoped memory for tpu_custom_call.1']
    #allocation5 [shape = 'u8[20480]{0}', space=vmem, size = 0x5000, scoped, tag = 'input window, operand 1, single buffered']
    #allocation6 [shape = 's32[1]{0}', space=sflag, size = 0x4, scoped, tag = 'scoped memory for tpu_custom_call.1']
    #allocation7 [shape = 'u8[36864]{0}', space=vmem, size = 0x9000, scoped, tag = 'input window, operand 2, single buffered']
    #allocation8 [shape = 'u8[1536]{0}', space=vmem, size = 0x800, scoped, tag = 'input window, operand 3, single buffered']
    #allocation9 [shape = 's32[1]{0}', space=sflag, size = 0x4, scoped, tag = 'scoped memory for tpu_custom_call.1']
    #allocation10 [shape = 'u8[30720]{0}', space=vmem, size = 0x7800, scoped, tag = 'input window, operand 4, single buffered']
    #allocation11 [shape = 'u8[61440]{0}', space=vmem, size = 0xf000, scoped, tag = 'output window, operand 0, single buffered']
    %11 = vsyncpa [#allocation3], 0
    %12 = vsyncpa [#allocation6], 0
    %13 = vsyncpa [#allocation9], 0
    %14 = vsyncpa [#allocation4], 0
    // Predicated region
    $region2: #{tpu_custom_call.1} parent=1 // pred_check
      _
    $region3: #{tpu_custom_call.1} parent=1 // pred_check_branch
      %16 = sbr.rel (0) target = $region5
    $region4: #{tpu_custom_call.1} parent=1 // pred_region
      %18 = vsyncadd [#allocation3], 0
      %s19 = sshll.u32 %s0, 4
      %s20 = int_to_ptr.hbm [resolvable:$true] %s19
      %s21 = sshll.u32 [#allocation2], 4
      %s22 = int_to_ptr.vmem [resolvable:$true] %s21
      %27 = dma.hbm_to_vmem [thread:$0]  %s20, 640, %s22, [#allocation3], 128, 128, 8
    $region5: #{tpu_custom_call.1} parent=1 // pred_fallthru
      _
    // Predicated region
    $region6: #{tpu_custom_call.1} parent=1 // pred_check
      _
    $region7: #{tpu_custom_call.1} parent=1 // pred_check_branch
      %29 = sbr.rel (0) target = $region9
    $region8: #{tpu_custom_call.1} parent=1 // pred_region
      %31 = vsyncadd [#allocation6], 0
      %s32 = sshll.u32 %s1, 4
      %s33 = int_to_ptr.hbm [resolvable:$true] %s32
      %s34 = sshll.u32 [#allocation5], 4
      %s35 = int_to_ptr.vmem [resolvable:$true] %s34
      %40 = dma.hbm_to_vmem [thread:$0]  %s33, 640, %s35, [#allocation6], 128, 128, 8
    $region9: #{tpu_custom_call.1} parent=1 // pred_fallthru
      _
    // Predicated region
    $region10: #{tpu_custom_call.1} parent=1 // pred_check
      _
    $region11: #{tpu_custom_call.1} parent=1 // pred_check_branch
      %42 = sbr.rel (0) target = $region13
    $region12: #{tpu_custom_call.1} parent=1 // pred_region
      %44 = vsyncadd [#allocation6], 0
      %s45 = sshll.u32 %s2, 4
      %s46 = int_to_ptr.hbm [resolvable:$true] %s45
      %s47 = sshll.u32 [#allocation7], 4
      %s48 = int_to_ptr.vmem [resolvable:$true] %s47
      %53 = dma.hbm_to_vmem [thread:$0]  %s46, 1152, %s48, [#allocation6], 192, 192, 12
    $region13: #{tpu_custom_call.1} parent=1 // pred_fallthru
      _
    // Predicated region
    $region14: #{tpu_custom_call.1} parent=1 // pred_check
      _
    $region15: #{tpu_custom_call.1} parent=1 // pred_check_branch
      %55 = sbr.rel (0) target = $region17
    $region16: #{tpu_custom_call.1} parent=1 // pred_region
      %57 = vsyncadd [#allocation9], 0
      %s59 = sshll.u32 %s3, 4
      %s60 = int_to_ptr.hbm [resolvable:$true] %s59
      %s61 = sshll.u32 [#allocation8], 4
      %s62 = int_to_ptr.vmem [resolvable:$true] %s61
      %64 = dma.hbm_to_vmem [thread:$0]  %s60, 48, %s62, [#allocation9]
    $region17: #{tpu_custom_call.1} parent=1 // pred_fallthru
      _
    // Predicated region
    $region18: #{tpu_custom_call.1} parent=1 // pred_check
      _
    $region19: #{tpu_custom_call.1} parent=1 // pred_check_branch
      %66 = sbr.rel (0) target = $region21
    $region20: #{tpu_custom_call.1} parent=1 // pred_region
      %68 = vsyncadd [#allocation9], 0
      %s69 = sshll.u32 %s4, 4
      %s70 = int_to_ptr.hbm [resolvable:$true] %s69
      %s71 = sshll.u32 [#allocation10], 4
      %s72 = int_to_ptr.vmem [resolvable:$true] %s71
      %77 = dma.hbm_to_vmem [thread:$0]  %s70, 960, %s72, [#allocation9], 192, 192, 12
    $region21: #{tpu_custom_call.1} parent=1 // pred_fallthru
      _
    // Predicated region
    $region22: #{tpu_custom_call.1} parent=1 // pred_check
      _
    $region23: #{tpu_custom_call.1} parent=1 // pred_check_branch
      %79 = sbr.rel (0) target = $region25
    $region24: #{tpu_custom_call.1} parent=1 // pred_region
      _
    $region25: #{tpu_custom_call.1} parent=1 // pred_fallthru
      _
    // Predicated region
    $region26: #{tpu_custom_call.1} parent=1 // pred_check
      _
    $region27: #{tpu_custom_call.1} parent=1 // pred_check_branch
      %81 = sbr.rel (0) target = $region29
    $region28: #{tpu_custom_call.1} parent=1 // pred_region
      %83 = dma.done [#allocation3], 640
    $region29: #{tpu_custom_call.1} parent=1 // pred_fallthru
      _
    // Predicated region
    $region30: #{tpu_custom_call.1} parent=1 // pred_check
      _
    $region31: #{tpu_custom_call.1} parent=1 // pred_check_branch
      %85 = sbr.rel (0) target = $region33
    $region32: #{tpu_custom_call.1} parent=1 // pred_region
      %87 = dma.done [#allocation6], 640
    $region33: #{tpu_custom_call.1} parent=1 // pred_fallthru
      _
    // Predicated region
    $region34: #{tpu_custom_call.1} parent=1 // pred_check
      _
    $region35: #{tpu_custom_call.1} parent=1 // pred_check_branch
      %89 = sbr.rel (0) target = $region37
    $region36: #{tpu_custom_call.1} parent=1 // pred_region
      %91 = dma.done [#allocation6], 1152
    $region37: #{tpu_custom_call.1} parent=1 // pred_fallthru
      _
    // Predicated region
    $region38: #{tpu_custom_call.1} parent=1 // pred_check
      _
    $region39: #{tpu_custom_call.1} parent=1 // pred_check_branch
      %93 = sbr.rel (0) target = $region41
    $region40: #{tpu_custom_call.1} parent=1 // pred_region
      %95 = dma.done [#allocation9], 48
    $region41: #{tpu_custom_call.1} parent=1 // pred_fallthru
      _
    // Predicated region
    $region42: #{tpu_custom_call.1} parent=1 // pred_check
      _
    $region43: #{tpu_custom_call.1} parent=1 // pred_check_branch
      %97 = sbr.rel (0) target = $region45
    $region44: #{tpu_custom_call.1} parent=1 // pred_region
      %99 = dma.done [#allocation9], 960
    $region45: #{tpu_custom_call.1} parent=1 // pred_fallthru
      _
    %v101 = vld [vmem:[#allocation2] sm:$0xff]
    %v102 = vld [vmem:[#allocation2 + $0x8] sm:$0xff]
    %v103 = vld [vmem:[#allocation2 + $0x10] sm:$0xff]
    %v104 = vld [vmem:[#allocation2 + $0x18] sm:$0xff]
    %v105 = vld [vmem:[#allocation2 + $0x20] sm:$0xff]
    %v106 = vpack.c.bf16 %v102, %v101
    %v107 = vpack.c.bf16 %v104, %v103
    %v108 = vpack.c.bf16 %v105, %v105
    %v109 = vld [vmem:[#allocation7] sm:$0xff]
    %v110 = vld [vmem:[#allocation7 + $0x8] sm:$0xf]
    %v111 = vld [vmem:[#allocation7 + $0xc] sm:$0xff]
    %v112 = vld [vmem:[#allocation7 + $0x14] sm:$0xf]
    %v113 = vld [vmem:[#allocation7 + $0x18] sm:$0xff]
    %v114 = vld [vmem:[#allocation7 + $0x20] sm:$0xf]
    %v115 = vld [vmem:[#allocation7 + $0x24] sm:$0xff]
    %v116 = vld [vmem:[#allocation7 + $0x2c] sm:$0xf]
    %v117 = vld [vmem:[#allocation7 + $0x30] sm:$0xff]
    %v118 = vld [vmem:[#allocation7 + $0x38] sm:$0xf]
    %v119 = vld [vmem:[#allocation7 + $0x3c] sm:$0xff]
    %v120 = vld [vmem:[#allocation7 + $0x44] sm:$0xf]
    %v121 = vld [vmem:[#allocation8] sm:$0x7]
    %v123 = vperm.slane %v121, 0
    %v124 = vperm.slane %v121, 1
    %v125 = vperm.slane %v121, 2
    %v141 = vunpack.c.l.b16 %v109
    %v142 = vunpack.c.h.b16 %v109
    %v143 = vunpack.c.l.b16 %v110
    %v144 = vunpack.c.l.b16 %v111
    %v145 = vunpack.c.h.b16 %v111
    %v146 = vunpack.c.l.b16 %v112
    %v147 = vunpack.c.l.b16 %v113
    %v148 = vunpack.c.h.b16 %v113
    %v149 = vunpack.c.l.b16 %v114
    %v150 = vunpack.c.l.b16 %v115
    %v151 = vunpack.c.h.b16 %v115
    %v152 = vunpack.c.l.b16 %v116
    %v153 = vunpack.c.l.b16 %v117
    %v154 = vunpack.c.h.b16 %v117
    %v155 = vunpack.c.l.b16 %v118
    %v156 = vunpack.c.l.b16 %v119
    %v157 = vunpack.c.h.b16 %v119
    %v158 = vunpack.c.l.b16 %v120
    %v159 = vpack.c.b16 %v144, %v141
    %v160 = vpack.c.b16 %v145, %v142
    %v161 = vpack.c.b16 %v146, %v143
    %v162 = vpack.c.b16 %v150, %v147
    %v163 = vpack.c.b16 %v151, %v148
    %v164 = vpack.c.b16 %v152, %v149
    %v165 = vpack.c.b16 %v156, %v153
    %v166 = vpack.c.b16 %v157, %v154
    %v167 = vpack.c.b16 %v158, %v155
    %vm177 = vcmask 392192
    %v179 = vsel %vm177, %v106, 0
    %v182 = vsel %vm177, %v107, 0
    %v185 = vsel %vm177, %v108, 0
    %187 = vmatpush.bf16.msra.mxu0 0
    %188 = vmatpush.bf16.msra.mxu0 0
    %189 = vmatpush.bf16.msra.mxu0 0
    %190 = vmatpush.bf16.msra.mxu0 0
    %191 = vmatpush.bf16.msra.mxu0 0
    %192 = vmatpush.bf16.msra.mxu0 %v165
    %193 = vmatpush.bf16.msra.mxu0 %v162
    %194 = vmatpush.bf16.msra.mxu0 %v159
    %195 = vmatmul.bf16.gmra.mxu0 %v179
    %v196 = vpop.f32.mrf.mxu0
    %v197 = vadd.f32 %v123, %v196
    %v198 = vpop.f32.mrf.mxu0
    %v199 = vadd.f32 %v123, %v198
    %200 = vmatmul.bf16.gmra.mxu0 %v182
    %v201 = vpop.f32.mrf.mxu0
    %v202 = vadd.f32 %v123, %v201
    %v203 = vpop.f32.mrf.mxu0
    %v204 = vadd.f32 %v123, %v203
    %205 = vmatmul.bf16.gmra.mxu0 %v185
    %v206 = vpop.f32.mrf.mxu0
    %v207 = vadd.f32 %v123, %v206
    %v208 = vpop.f32.mrf.mxu0
    %209 = vdwg.mxu0
    %210 = vmatpush.bf16.msra.mxu0 0
    %211 = vmatpush.bf16.msra.mxu0 0
    %212 = vmatpush.bf16.msra.mxu0 0
    %213 = vmatpush.bf16.msra.mxu0 0
    %214 = vmatpush.bf16.msra.mxu0 0
    %215 = vmatpush.bf16.msra.mxu0 %v166
    %216 = vmatpush.bf16.msra.mxu0 %v163
    %217 = vmatpush.bf16.msra.mxu0 %v160
    %218 = vmatmul.bf16.gmra.mxu0 %v179
    %v219 = vpop.f32.mrf.mxu0
    %v220 = vadd.f32 %v124, %v219
    %v221 = vpop.f32.mrf.mxu0
    %v222 = vadd.f32 %v124, %v221
    %223 = vmatmul.bf16.gmra.mxu0 %v182
    %v224 = vpop.f32.mrf.mxu0
    %v225 = vadd.f32 %v124, %v224
    %v226 = vpop.f32.mrf.mxu0
    %v227 = vadd.f32 %v124, %v226
    %228 = vmatmul.bf16.gmra.mxu0 %v185
    %v229 = vpop.f32.mrf.mxu0
    %v230 = vadd.f32 %v124, %v229
    %v231 = vpop.f32.mrf.mxu0
    %232 = vdwg.mxu0
    %233 = vmatpush.bf16.msra.mxu0 0
    %234 = vmatpush.bf16.msra.mxu0 0
    %235 = vmatpush.bf16.msra.mxu0 0
    %236 = vmatpush.bf16.msra.mxu0 0
    %237 = vmatpush.bf16.msra.mxu0 0
    %238 = vmatpush.bf16.msra.mxu0 %v167
    %239 = vmatpush.bf16.msra.mxu0 %v164
    %240 = vmatpush.bf16.msra.mxu0 %v161
    %241 = vmatmul.bf16.gmra.mxu0 %v179
    %v242 = vpop.f32.mrf.mxu0
    %v243 = vadd.f32 %v125, %v242
    %v244 = vpop.f32.mrf.mxu0
    %v245 = vadd.f32 %v125, %v244
    %246 = vmatmul.bf16.gmra.mxu0 %v182
    %v247 = vpop.f32.mrf.mxu0
    %v248 = vadd.f32 %v125, %v247
    %v249 = vpop.f32.mrf.mxu0
    %v250 = vadd.f32 %v125, %v249
    %251 = vmatmul.bf16.gmra.mxu0 %v185
    %v252 = vpop.f32.mrf.mxu0
    %v253 = vadd.f32 %v125, %v252
    %v254 = vpop.f32.mrf.mxu0
    %255 = vdwg.mxu0
    %v256 = vmax.f32 %v197, 0.0
    %v257 = vmax.f32 %v220, 0.0
    %v258 = vmax.f32 %v243, 0.0
    %v259 = vmax.f32 %v199, 0.0
    %v260 = vmax.f32 %v222, 0.0
    %v261 = vmax.f32 %v245, 0.0
    %v262 = vmax.f32 %v202, 0.0
    %v263 = vmax.f32 %v225, 0.0
    %v264 = vmax.f32 %v248, 0.0
    %v265 = vmax.f32 %v204, 0.0
    %v266 = vmax.f32 %v227, 0.0
    %v267 = vmax.f32 %v250, 0.0
    %v268 = vmax.f32 %v207, 0.0
    %v269 = vmax.f32 %v230, 0.0
    %v270 = vmax.f32 %v253, 0.0
    %v271 = vld [vmem:[#allocation5] sm:$0xff]
    %v272 = vld [vmem:[#allocation5 + $0x8] sm:$0xff]
    %v273 = vld [vmem:[#allocation5 + $0x10] sm:$0xff]
    %v274 = vld [vmem:[#allocation5 + $0x18] sm:$0xff]
    %v275 = vld [vmem:[#allocation5 + $0x20] sm:$0xff]
    %v276 = vpack.c.bf16 %v272, %v271
    %v277 = vpack.c.bf16 %v274, %v273
    %v278 = vpack.c.bf16 %v275, %v275
    %v279 = vld [vmem:[#allocation10] sm:$0xff]
    %v280 = vld [vmem:[#allocation10 + $0x8] sm:$0xf]
    %v281 = vld [vmem:[#allocation10 + $0xc] sm:$0xff]
    %v282 = vld [vmem:[#allocation10 + $0x14] sm:$0xf]
    %v283 = vld [vmem:[#allocation10 + $0x18] sm:$0xff]
    %v284 = vld [vmem:[#allocation10 + $0x20] sm:$0xf]
    %v285 = vld [vmem:[#allocation10 + $0x24] sm:$0xff]
    %v286 = vld [vmem:[#allocation10 + $0x2c] sm:$0xf]
    %v287 = vld [vmem:[#allocation10 + $0x30] sm:$0xff]
    %v288 = vld [vmem:[#allocation10 + $0x38] sm:$0xf]
    %v289 = vld [vmem:[%s5] sm:$0x7]
    %v291 = vperm.slane %v289, 0
    %v292 = vperm.slane %v289, 1
    %v293 = vperm.slane %v289, 2
    %v307 = vunpack.c.l.b16 %v279
    %v308 = vunpack.c.h.b16 %v279
    %v309 = vunpack.c.l.b16 %v280
    %v310 = vunpack.c.l.b16 %v281
    %v311 = vunpack.c.h.b16 %v281
    %v312 = vunpack.c.l.b16 %v282
    %v313 = vunpack.c.l.b16 %v283
    %v314 = vunpack.c.h.b16 %v283
    %v315 = vunpack.c.l.b16 %v284
    %v316 = vunpack.c.l.b16 %v285
    %v317 = vunpack.c.h.b16 %v285
    %v318 = vunpack.c.l.b16 %v286
    %v319 = vunpack.c.l.b16 %v287
    %v320 = vunpack.c.h.b16 %v287
    %v321 = vunpack.c.l.b16 %v288
    %v322 = vpack.c.b16 %v310, %v307
    %v323 = vpack.c.b16 %v311, %v308
    %v324 = vpack.c.b16 %v312, %v309
    %v325 = vpack.c.b16 %v316, %v313
    %v326 = vpack.c.b16 %v317, %v314
    %v327 = vpack.c.b16 %v318, %v315
    %v328 = vpack.c.b16 %v319, %v319
    %v329 = vpack.c.b16 %v320, %v320
    %v330 = vpack.c.b16 %v321, %v321
    %vm337 = vcmask 326656
    %v339 = vsel %vm337, %v276, 0
    %v342 = vsel %vm337, %v277, 0
    %v345 = vsel %vm337, %v278, 0
    %vm347 = vcmask 1043456
    %v349 = vsel %vm347, %v328, 0
    %v352 = vsel %vm347, %v329, 0
    %v355 = vsel %vm347, %v330, 0
    %357 = vmatpush.bf16.msra.mxu0 0
    %358 = vmatpush.bf16.msra.mxu0 0
    %359 = vmatpush.bf16.msra.mxu0 0
    %360 = vmatpush.bf16.msra.mxu0 0
    %361 = vmatpush.bf16.msra.mxu0 0
    %362 = vmatpush.bf16.msra.mxu0 %v349
    %363 = vmatpush.bf16.msra.mxu0 %v325
    %364 = vmatpush.bf16.msra.mxu0 %v322
    %365 = vmatmul.bf16.gmra.mxu0 %v339
    %v366 = vpop.f32.mrf.mxu0
    %v367 = vadd.f32 %v291, %v366
    %v368 = vpop.f32.mrf.mxu0
    %v369 = vadd.f32 %v291, %v368
    %370 = vmatmul.bf16.gmra.mxu0 %v342
    %v371 = vpop.f32.mrf.mxu0
    %v372 = vadd.f32 %v291, %v371
    %v373 = vpop.f32.mrf.mxu0
    %v374 = vadd.f32 %v291, %v373
    %375 = vmatmul.bf16.gmra.mxu0 %v345
    %v376 = vpop.f32.mrf.mxu0
    %v377 = vadd.f32 %v291, %v376
    %v378 = vpop.f32.mrf.mxu0
    %379 = vdwg.mxu0
    %380 = vmatpush.bf16.msra.mxu0 0
    %381 = vmatpush.bf16.msra.mxu0 0
    %382 = vmatpush.bf16.msra.mxu0 0
    %383 = vmatpush.bf16.msra.mxu0 0
    %384 = vmatpush.bf16.msra.mxu0 0
    %385 = vmatpush.bf16.msra.mxu0 %v352
    %386 = vmatpush.bf16.msra.mxu0 %v326
    %387 = vmatpush.bf16.msra.mxu0 %v323
    %388 = vmatmul.bf16.gmra.mxu0 %v339
    %v389 = vpop.f32.mrf.mxu0
    %v390 = vadd.f32 %v292, %v389
    %v391 = vpop.f32.mrf.mxu0
    %v392 = vadd.f32 %v292, %v391
    %393 = vmatmul.bf16.gmra.mxu0 %v342
    %v394 = vpop.f32.mrf.mxu0
    %v395 = vadd.f32 %v292, %v394
    %v396 = vpop.f32.mrf.mxu0
    %v397 = vadd.f32 %v292, %v396
    %398 = vmatmul.bf16.gmra.mxu0 %v345
    %v399 = vpop.f32.mrf.mxu0
    %v400 = vadd.f32 %v292, %v399
    %v401 = vpop.f32.mrf.mxu0
    %402 = vdwg.mxu0
    %403 = vmatpush.bf16.msra.mxu0 0
    %404 = vmatpush.bf16.msra.mxu0 0
    %405 = vmatpush.bf16.msra.mxu0 0
    %406 = vmatpush.bf16.msra.mxu0 0
    %407 = vmatpush.bf16.msra.mxu0 0
    %408 = vmatpush.bf16.msra.mxu0 %v355
    %409 = vmatpush.bf16.msra.mxu0 %v327
    %410 = vmatpush.bf16.msra.mxu0 %v324
    %411 = vmatmul.bf16.gmra.mxu0 %v339
    %v412 = vpop.f32.mrf.mxu0
    %v413 = vadd.f32 %v293, %v412
    %v414 = vpop.f32.mrf.mxu0
    %v415 = vadd.f32 %v293, %v414
    %416 = vmatmul.bf16.gmra.mxu0 %v342
    %v417 = vpop.f32.mrf.mxu0
    %v418 = vadd.f32 %v293, %v417
    %v419 = vpop.f32.mrf.mxu0
    %v420 = vadd.f32 %v293, %v419
    %421 = vmatmul.bf16.gmra.mxu0 %v345
    %v422 = vpop.f32.mrf.mxu0
    %v423 = vadd.f32 %v293, %v422
    %v424 = vpop.f32.mrf.mxu0
    %425 = vdwg.mxu0
    %v426 = vmax.f32 %v367, 0.0
    %v427 = vmax.f32 %v390, 0.0
    %v428 = vmax.f32 %v413, 0.0
    %v429 = vmax.f32 %v369, 0.0
    %v430 = vmax.f32 %v392, 0.0
    %v431 = vmax.f32 %v415, 0.0
    %v432 = vmax.f32 %v372, 0.0
    %v433 = vmax.f32 %v395, 0.0
    %v434 = vmax.f32 %v418, 0.0
    %v435 = vmax.f32 %v374, 0.0
    %v436 = vmax.f32 %v397, 0.0
    %v437 = vmax.f32 %v420, 0.0
    %v438 = vmax.f32 %v377, 0.0
    %v439 = vmax.f32 %v400, 0.0
    %v440 = vmax.f32 %v423, 0.0
    %v441 = vmul.f32 %v426, %v426
    %v442 = vmul.f32 %v427, %v427
    %v443 = vmul.f32 %v428, %v428
    %v444 = vmul.f32 %v429, %v429
    %v445 = vmul.f32 %v430, %v430
    %v446 = vmul.f32 %v431, %v431
    %v447 = vmul.f32 %v432, %v432
    %v448 = vmul.f32 %v433, %v433
    %v449 = vmul.f32 %v434, %v434
    %v450 = vmul.f32 %v435, %v435
    %v451 = vmul.f32 %v436, %v436
    %v452 = vmul.f32 %v437, %v437
    %v453 = vmul.f32 %v438, %v438
    %v454 = vmul.f32 %v439, %v439
    %v455 = vmul.f32 %v440, %v440
    %v456 = vmul.f32 %v441, %v256
    %v457 = vmul.f32 %v442, %v257
    %v458 = vmul.f32 %v443, %v258
    %v459 = vmul.f32 %v444, %v259
    %v460 = vmul.f32 %v445, %v260
    %v461 = vmul.f32 %v446, %v261
    %v462 = vmul.f32 %v447, %v262
    %v463 = vmul.f32 %v448, %v263
    %v464 = vmul.f32 %v449, %v264
    %v465 = vmul.f32 %v450, %v265
    %v466 = vmul.f32 %v451, %v266
    %v467 = vmul.f32 %v452, %v267
    %v468 = vmul.f32 %v453, %v268
    %v469 = vmul.f32 %v454, %v269
    %v470 = vmul.f32 %v455, %v270
    %471 = vst [vmem:[#allocation11] sm:$0xff] %v456
    %472 = vst [vmem:[#allocation11 + $0x8] sm:$0xff] %v457
    %473 = vst [vmem:[#allocation11 + $0x10] sm:$0xff] %v458
    %474 = vst [vmem:[#allocation11 + $0x18] sm:$0xff] %v459
    %475 = vst [vmem:[#allocation11 + $0x20] sm:$0xff] %v460
    %476 = vst [vmem:[#allocation11 + $0x28] sm:$0xff] %v461
    %477 = vst [vmem:[#allocation11 + $0x30] sm:$0xff] %v462
    %478 = vst [vmem:[#allocation11 + $0x38] sm:$0xff] %v463
    %479 = vst [vmem:[#allocation11 + $0x40] sm:$0xff] %v464
    %480 = vst [vmem:[#allocation11 + $0x48] sm:$0xff] %v465
    %481 = vst [vmem:[#allocation11 + $0x50] sm:$0xff] %v466
    %482 = vst [vmem:[#allocation11 + $0x58] sm:$0xff] %v467
    %483 = vst [vmem:[#allocation11 + $0x60] sm:$0xff] %v468
    %484 = vst [vmem:[#allocation11 + $0x68] sm:$0xff] %v469
    %485 = vst [vmem:[#allocation11 + $0x70] sm:$0xff] %v470
    // Predicated region
    $region46: #{tpu_custom_call.1} parent=1 // pred_check
      _
    $region47: #{tpu_custom_call.1} parent=1 // pred_check_branch
      %487 = sbr.rel (0) target = $region49
    $region48: #{tpu_custom_call.1} parent=1 // pred_region
      %489 = vsyncadd [#allocation4], 0
      %s490 = sshll.u32 [#allocation11], 4
      %s491 = int_to_ptr.vmem [resolvable:$true] %s490
      %s492 = sshll.u32 %s6, 4
      %s493 = int_to_ptr.hbm [resolvable:$true] %s492
      %498 = dma.vmem_to_hbm [thread:$0]  %s491, 1920, %s493, [#allocation4], 384, 384, 24
    $region49: #{tpu_custom_call.1} parent=1 // pred_fallthru
      _
    // Predicated region
    $region50: #{tpu_custom_call.1} parent=1 // pred_check
      _
    $region51: #{tpu_custom_call.1} parent=1 // pred_check_branch
      %500 = sbr.rel (0) target = $region53
    $region52: #{tpu_custom_call.1} parent=1 // pred_region
      %502 = dma.done [#allocation4], 1920
    $region53: #{tpu_custom_call.1} parent=1 // pred_fallthru
      _
    %503 = vsyncpa [#allocation3], 1
    %504 = vsyncpa [#allocation6], 1
    %505 = vsyncpa [#allocation9], 1
    %506 = vsyncpa [#allocation4], 1

</llo_original>
